<compile_context>
chip_gen: v7x
topology: tpu7x:2x2x1
jax: 0.10.0
libtpu: 0.0.40
codegen_flags: <defaults>
</compile_context>

<pallas_src>
import functools

import jax
import jax.numpy as jnp
from jax import lax
from jax.experimental import pallas as pl
from jax.experimental.pallas import tpu as pltpu


def _focal_kernel(x_ref, t_ref, out_ref, *, num_class, gamma, smooth,
                  hw, r_block, needs_mask):
    """One (1, C, R, 128) logits block -> (1, 1, 128) lane-dense partial sum."""
    tcls = t_ref[...].reshape(r_block, 128)                        # (R,128) i32

    # ---- softmax over the leading class axis on packed (R,128) vregs -----
    if num_class <= 16:
        # Statically unrolled class reduction: pure VPU/EUP elementwise ops.
        xs = [x_ref[0, k, :, :].astype(jnp.float32) for k in range(num_class)]
        m = xs[0]
        for k in range(1, num_class):
            m = jnp.maximum(m, xs[k])
        denom = jnp.zeros_like(m)
        e_t = jnp.zeros_like(m)
        for k in range(num_class):
            ek = jnp.exp(xs[k] - m)
            denom = denom + ek
            e_t = jnp.where(tcls == k, ek, e_t)
    else:
        # Large class counts: vectorized reduction over the leading axis.
        x = x_ref[...].astype(jnp.float32).reshape(num_class, r_block, 128)
        m = jnp.max(x, axis=0)
        e = jnp.exp(x - m[None, :, :])
        denom = jnp.sum(e, axis=0)
        cls = lax.broadcasted_iota(jnp.int32, (num_class, r_block, 128), 0)
        e_t = jnp.sum(jnp.where(cls == tcls[None, :, :], e, 0.0), axis=0)

    p_t = e_t * pl.reciprocal(denom, approx=False)                 # (R,128)

    # pt = sum(clamped_one_hot * prob) in closed form (uses sum(prob) == 1).
    if smooth:
        lo = smooth / (num_class - 1)
        hi = 1.0 - smooth
        pt = (hi - lo) * p_t + lo
    else:
        pt = p_t
    pt = pt + 1e-10
    logpt = jnp.log(pt)

    one_minus = 1.0 - pt
    g = float(gamma)
    if g == int(g) and 0 <= int(g) <= 4:
        gi = int(g)
        if gi == 0:
            focal = jnp.ones_like(one_minus)
        else:
            focal = one_minus
            for _ in range(gi - 1):
                focal = focal * one_minus
    else:
        focal = jnp.power(one_minus, g)
    loss = -focal * logpt                                          # (R,128)

    def write(vals):
        # Single sublane reduction R -> 1, lane-dense 128-wide store.
        out_ref[...] = jnp.sum(vals, axis=0, keepdims=True).reshape(1, 1, 128)

    if needs_mask:
        j = pl.program_id(1)
        last = pl.num_programs(1) - 1

        # Only the last grid step can contain padded / ragged positions; stale
        # VMEM there may flow through exp/log as NaN/Inf, but the select below
        # (which does not propagate NaN) zeroes those lanes before the sum.
        @pl.when(j == last)
        def _():
            row = lax.broadcasted_iota(jnp.int32, (r_block, 128), 0)
            lane = lax.broadcasted_iota(jnp.int32, (r_block, 128), 1)
            pos = (j * r_block + row) * 128 + lane
            write(jnp.where(pos < hw, loss, 0.0))

        @pl.when(j != last)
        def _():
            write(loss)
    else:
        write(loss)


def multi_focal_loss(x_nchw, target, *, num_class, gamma=2.0, smooth=None,
                     size_average=True, block_rows=None):
    """x_nchw: (N, C, H, W) float logits; target: (N, H, W) int class ids."""
    n, c, h, w = x_nchw.shape
    assert c == num_class
    if smooth:
        # Closed-form smoothing matches torch.clamp(one_hot, lo, hi) only
        # while lo <= hi (i.e. smooth <= (C-1)/C).
        assert smooth / (num_class - 1) <= 1.0 - smooth, (
            "smooth value too large for closed-form label smoothing")
    hw = h * w

    # NCHW -> (N, C, HW) is a free reshape.  Pad HW to a 128 multiple only if
    # needed (no padding to a full tile multiple), then fold the spatial axis
    # onto (rows, 128 lanes) so per-pixel math uses packed vregs.
    hw128 = ((hw + 127) // 128) * 128
    r_total = hw128 // 128
    x3 = x_nchw.reshape(n, c, hw)
    t3 = target.reshape(n, 1, hw).astype(jnp.int32)
    if hw128 != hw:
        x3 = jnp.pad(x3, ((0, 0), (0, 0), (0, hw128 - hw)))
        t3 = jnp.pad(t3, ((0, 0), (0, 0), (0, hw128 - hw)))
    x4 = x3.reshape(n, c, r_total, 128)
    t4 = t3.reshape(n, 1, r_total, 128)

    # Rows per grid step: dtype-aware ~4 MiB of input per step, multiple of 8
    # sublanes; double-buffered footprint stays well under every generation's
    # scoped-VMEM limit (v5e 16 MiB default, v7x 64 MiB physical).
    itemsize = jnp.dtype(x_nchw.dtype).itemsize
    bytes_per_row = 128 * (c * itemsize + 4)           # logits + i32 targets
    budget = 4 * 1024 * 1024
    try:  # Shrink on generations that report less VMEM (query is best-effort).
        cap = getattr(pltpu.get_tpu_info(), "vmem_capacity_bytes", None)
        if cap:
            budget = max(1 << 20, min(budget, cap // 16))
    except Exception:
        pass
    r_cap = ((r_total + 7) // 8) * 8
    if block_rows is None:
        r_block = min(budget // bytes_per_row, 1024, r_cap)
    else:
        r_block = min(int(block_rows), r_cap)
    r_block = max(8, (r_block // 8) * 8)
    grid_j = pl.cdiv(r_total, r_block)

    # Megacore: keep at least 2 grid steps when there is enough work so a
    # 2-TensorCore chip is not left half idle.
    if n * grid_j < 2 and r_total >= 16:
        r_block = max(8, ((r_total + 1) // 2 + 7) // 8 * 8)
        grid_j = pl.cdiv(r_total, r_block)

    needs_mask = (grid_j * r_block * 128) != hw

    kernel = functools.partial(
        _focal_kernel, num_class=num_class, gamma=float(gamma), smooth=smooth,
        hw=hw, r_block=r_block, needs_mask=needs_mask)

    partials = pl.pallas_call(
        kernel,
        out_shape=jax.ShapeDtypeStruct((n, 1, grid_j * 128), jnp.float32),
        grid_spec=pltpu.PrefetchScalarGridSpec(
            num_scalar_prefetch=0,
            grid=(n, grid_j),
            in_specs=[
                pl.BlockSpec((1, c, r_block, 128), lambda i, j: (i, 0, j, 0)),
                pl.BlockSpec((1, 1, r_block, 128), lambda i, j: (i, 0, j, 0)),
            ],
            out_specs=pl.BlockSpec((1, 1, 128), lambda i, j: (i, 0, j)),
        ),
        compiler_params=pltpu.CompilerParams(
            dimension_semantics=("parallel", "parallel"),
            vmem_limit_bytes=32 * 1024 * 1024),
    )(x4, t4)

    total = jnp.sum(partials)
    if size_average:
        return total / jnp.float32(n * hw)
    return total


def multi_focal_loss_ref(x_nchw, target, *, num_class, gamma=2.0, smooth=None,
                         size_average=True):
    """Pure-JAX reference mirroring the PyTorch forward exactly."""
    n, c, h, w = x_nchw.shape
    prob = jax.nn.softmax(x_nchw.astype(jnp.float32), axis=1)
    prob = jnp.transpose(prob.reshape(n, c, h * w), (0, 2, 1)).reshape(-1, c)
    tgt = target.reshape(-1).astype(jnp.int32)
    one_hot = jax.nn.one_hot(tgt, num_class, dtype=jnp.float32)
    if smooth:
        one_hot = jnp.clip(one_hot, smooth / (num_class - 1), 1.0 - smooth)
    pt = jnp.sum(one_hot * prob, axis=1) + 1e-10
    loss = -jnp.power(1.0 - pt, gamma) * jnp.log(pt)
    return jnp.mean(loss) if size_average else jnp.sum(loss)


if __name__ == "__main__":
    num_class = 4
    key = jax.random.PRNGKey(0)
    kx, kt, kx2, kt2 = jax.random.split(key, 4)

    # Case 1: nominal small shape, gamma=2, no smoothing, mean reduction.
    x = jax.random.normal(kx, (2, num_class, 16, 16), dtype=jnp.float32)
    target = jax.random.randint(kt, (2, 16, 16), 0, num_class, dtype=jnp.int32)
    out = jax.block_until_ready(
        multi_focal_loss(x, target, num_class=num_class, gamma=2.0))
    ref = multi_focal_loss_ref(x, target, num_class=num_class, gamma=2.0)
    assert jnp.allclose(out, ref, rtol=1e-5, atol=1e-6), (out, ref)

    # Case 2: non-128-multiple spatial extent (exercises 128-pad + ragged
    # last block + in-kernel mask), with label smoothing and sum reduction.
    x2 = jax.random.normal(kx2, (2, num_class, 5, 7), dtype=jnp.float32)
    t2 = jax.random.randint(kt2, (2, 5, 7), 0, num_class, dtype=jnp.int32)
    out2 = jax.block_until_ready(
        multi_focal_loss(x2, t2, num_class=num_class, gamma=2.0, smooth=0.1,
                         size_average=False))
    ref2 = multi_focal_loss_ref(x2, t2, num_class=num_class, gamma=2.0,
                                smooth=0.1, size_average=False)
    assert jnp.allclose(out2, ref2, rtol=1e-5, atol=1e-5), (out2, ref2)

    print("KERNEL_OK")
</pallas_src>

<mosaic_0001>
module attributes {stable_mosaic.version = 11 : i64} {
  func.func @_focal_kernel(%arg0: i32, %arg1: i32, %arg2: memref<1x4x8x128xf32, #tpu.memory_space<vmem>>, %arg3: memref<1x1x8x128xi32, #tpu.memory_space<vmem>>, %arg4: memref<1x1x128xf32, #tpu.memory_space<vmem>>) attributes {dimension_semantics = [#tpu.dimension_semantics<parallel>, #tpu.dimension_semantics<parallel>], iteration_bounds = array<i64: 2, 1>, scalar_prefetch = 0 : i64, scratch_operands = 0 : i64, tpu.core_type = #tpu.core_type<tc>, window_params = [{transform_indices = @transform_0, window_bounds = array<i64: 1, 4, 8, 128>}, {transform_indices = @transform_1, window_bounds = array<i64: 1, 1, 8, 128>}, {transform_indices = @transform_2, window_bounds = array<i64: 1, 1, 128>}]} {
    %c0 = arith.constant 0 : index
    %c0_0 = arith.constant 0 : index
    %c0_1 = arith.constant 0 : index
    %c0_2 = arith.constant 0 : index
    %0 = vector.load %arg3[%c0, %c0_0, %c0_1, %c0_2] : memref<1x1x8x128xi32, #tpu.memory_space<vmem>>, vector<1x1x8x128xi32>
    %1 = vector.shape_cast %0 : vector<1x1x8x128xi32> to vector<8x128xi32>
    %c0_3 = arith.constant 0 : index
    %c0_4 = arith.constant 0 : index
    %c0_5 = arith.constant 0 : index
    %c0_6 = arith.constant 0 : index
    %2 = vector.load %arg2[%c0_3, %c0_4, %c0_5, %c0_6] : memref<1x4x8x128xf32, #tpu.memory_space<vmem>>, vector<1x1x8x128xf32>
    %3 = vector.shape_cast %2 : vector<1x1x8x128xf32> to vector<8x128xf32>
    %c0_7 = arith.constant 0 : index
    %c1 = arith.constant 1 : index
    %c0_8 = arith.constant 0 : index
    %c0_9 = arith.constant 0 : index
    %4 = vector.load %arg2[%c0_7, %c1, %c0_8, %c0_9] : memref<1x4x8x128xf32, #tpu.memory_space<vmem>>, vector<1x1x8x128xf32>
    %5 = vector.shape_cast %4 : vector<1x1x8x128xf32> to vector<8x128xf32>
    %c0_10 = arith.constant 0 : index
    %c2 = arith.constant 2 : index
    %c0_11 = arith.constant 0 : index
    %c0_12 = arith.constant 0 : index
    %6 = vector.load %arg2[%c0_10, %c2, %c0_11, %c0_12] : memref<1x4x8x128xf32, #tpu.memory_space<vmem>>, vector<1x1x8x128xf32>
    %7 = vector.shape_cast %6 : vector<1x1x8x128xf32> to vector<8x128xf32>
    %c0_13 = arith.constant 0 : index
    %c3 = arith.constant 3 : index
    %c0_14 = arith.constant 0 : index
    %c0_15 = arith.constant 0 : index
    %8 = vector.load %arg2[%c0_13, %c3, %c0_14, %c0_15] : memref<1x4x8x128xf32, #tpu.memory_space<vmem>>, vector<1x1x8x128xf32>
    %9 = vector.shape_cast %8 : vector<1x1x8x128xf32> to vector<8x128xf32>
    %10 = arith.maximumf %3, %5 : vector<8x128xf32>
    %11 = arith.maximumf %10, %7 : vector<8x128xf32>
    %12 = arith.maximumf %11, %9 : vector<8x128xf32>
    %cst = arith.constant 0.000000e+00 : f32
    %13 = vector.broadcast %cst : f32 to vector<8x128xf32>
    %cst_16 = arith.constant 0.000000e+00 : f32
    %14 = vector.broadcast %cst_16 : f32 to vector<8x128xf32>
    %15 = arith.subf %3, %12 : vector<8x128xf32>
    %16 = math.exp %15 : vector<8x128xf32>
    %17 = arith.addf %13, %16 : vector<8x128xf32>
    %c0_i32 = arith.constant 0 : i32
    %18 = vector.broadcast %c0_i32 : i32 to vector<8x128xi32>
    %19 = arith.cmpi eq, %1, %18 : vector<8x128xi32>
    %20 = arith.select %19, %16, %14 : vector<8x128xi1>, vector<8x128xf32>
    %21 = arith.subf %5, %12 : vector<8x128xf32>
    %22 = math.exp %21 : vector<8x128xf32>
    %23 = arith.addf %17, %22 : vector<8x128xf32>
    %c1_i32 = arith.constant 1 : i32
    %24 = vector.broadcast %c1_i32 : i32 to vector<8x128xi32>
    %25 = arith.cmpi eq, %1, %24 : vector<8x128xi32>
    %26 = arith.select %25, %22, %20 : vector<8x128xi1>, vector<8x128xf32>
    %27 = arith.subf %7, %12 : vector<8x128xf32>
    %28 = math.exp %27 : vector<8x128xf32>
    %29 = arith.addf %23, %28 : vector<8x128xf32>
    %c2_i32 = arith.constant 2 : i32
    %30 = vector.broadcast %c2_i32 : i32 to vector<8x128xi32>
    %31 = arith.cmpi eq, %1, %30 : vector<8x128xi32>
    %32 = arith.select %31, %28, %26 : vector<8x128xi1>, vector<8x128xf32>
    %33 = arith.subf %9, %12 : vector<8x128xf32>
    %34 = math.exp %33 : vector<8x128xf32>
    %35 = arith.addf %29, %34 : vector<8x128xf32>
    %c3_i32 = arith.constant 3 : i32
    %36 = vector.broadcast %c3_i32 : i32 to vector<8x128xi32>
    %37 = arith.cmpi eq, %1, %36 : vector<8x128xi32>
    %38 = arith.select %37, %34, %32 : vector<8x128xi1>, vector<8x128xf32>
    %39 = tpu.reciprocal %35 : vector<8x128xf32> -> vector<8x128xf32>
    %40 = arith.mulf %38, %39 : vector<8x128xf32>
    %cst_17 = arith.constant 1.000000e-10 : f32
    %41 = vector.broadcast %cst_17 : f32 to vector<8x128xf32>
    %42 = arith.addf %40, %41 : vector<8x128xf32>
    %43 = math.log %42 : vector<8x128xf32>
    %cst_18 = arith.constant 1.000000e+00 : f32
    %44 = vector.broadcast %cst_18 : f32 to vector<8x128xf32>
    %45 = arith.subf %44, %42 : vector<8x128xf32>
    %46 = arith.mulf %45, %45 : vector<8x128xf32>
    %cst_19 = arith.constant 0.000000e+00 : f32
    %47 = vector.broadcast %cst_19 : f32 to vector<8x128xf32>
    %48 = arith.subf %47, %46 : vector<8x128xf32>
    %49 = arith.mulf %48, %43 : vector<8x128xf32>
    %c0_i32_20 = arith.constant 0 : i32
    %50 = arith.cmpi eq, %arg1, %c0_i32_20 : i32
    %51 = arith.extui %50 : i1 to i32
    %c0_i32_21 = arith.constant 0 : i32
    %52 = arith.cmpi ne, %51, %c0_i32_21 : i32
    scf.if %52 {
      %56 = tpu.iota {dimensions = array<i32: 0>} : vector<8x128xi32>
      %57 = tpu.iota {dimensions = array<i32: 1>} : vector<8x128xi32>
      %c8_i32 = arith.constant 8 : i32
      %58 = arith.muli %arg1, %c8_i32 : i32
      %59 = vector.broadcast %58 : i32 to vector<8x128xi32>
      %60 = arith.addi %59, %56 : vector<8x128xi32>
      %c128_i32 = arith.constant 128 : i32
      %61 = vector.broadcast %c128_i32 : i32 to vector<8x128xi32>
      %62 = arith.muli %60, %61 : vector<8x128xi32>
      %63 = arith.addi %62, %57 : vector<8x128xi32>
      %c256_i32 = arith.constant 256 : i32
      %64 = vector.broadcast %c256_i32 : i32 to vector<8x128xi32>
      %65 = arith.cmpi slt, %63, %64 : vector<8x128xi32>
      %cst_24 = arith.constant 0.000000e+00 : f32
      %66 = vector.broadcast %cst_24 : f32 to vector<8x128xf32>
      %67 = arith.select %65, %49, %66 : vector<8x128xi1>, vector<8x128xf32>
      %cst_25 = arith.constant dense<0.000000e+00> : vector<128xf32>
      %68 = vector.multi_reduction <add>, %67, %cst_25 [0] : vector<8x128xf32> to vector<128xf32>
      %69 = vector.shape_cast %68 : vector<128xf32> to vector<1x128xf32>
      %70 = vector.shape_cast %69 : vector<1x128xf32> to vector<1x1x128xf32>
      %c0_26 = arith.constant 0 : index
      %c0_27 = arith.constant 0 : index
      %c0_28 = arith.constant 0 : index
      %71 = vector.load %arg4[%c0_26, %c0_27, %c0_28] : memref<1x1x128xf32, #tpu.memory_space<vmem>>, vector<1x1x128xf32>
      tpu.vector_store %arg4[%c0_26, %c0_27, %c0_28], %70 {strides = array<i32>} : memref<1x1x128xf32, #tpu.memory_space<vmem>>, vector<1x1x128xf32>,
    } else {
    }
    %c0_i32_22 = arith.constant 0 : i32
    %53 = arith.cmpi ne, %arg1, %c0_i32_22 : i32
    %54 = arith.extui %53 : i1 to i32
    %c0_i32_23 = arith.constant 0 : i32
    %55 = arith.cmpi ne, %54, %c0_i32_23 : i32
    scf.if %55 {
      %cst_24 = arith.constant dense<0.000000e+00> : vector<128xf32>
      %56 = vector.multi_reduction <add>, %49, %cst_24 [0] : vector<8x128xf32> to vector<128xf32>
      %57 = vector.shape_cast %56 : vector<128xf32> to vector<1x128xf32>
      %58 = vector.shape_cast %57 : vector<1x128xf32> to vector<1x1x128xf32>
      %c0_25 = arith.constant 0 : index
      %c0_26 = arith.constant 0 : index
      %c0_27 = arith.constant 0 : index
      %59 = vector.load %arg4[%c0_25, %c0_26, %c0_27] : memref<1x1x128xf32, #tpu.memory_space<vmem>>, vector<1x1x128xf32>
      tpu.vector_store %arg4[%c0_25, %c0_26, %c0_27], %58 {strides = array<i32>} : memref<1x1x128xf32, #tpu.memory_space<vmem>>, vector<1x1x128xf32>,
    } else {
    }
    return
  }
  func.func @transform_0(%arg0: i32, %arg1: i32) -> (i32, i32, i32, i32) {
    %c0_i32 = arith.constant 0 : i32
    %c0_i32_0 = arith.constant 0 : i32
    %c0_i32_1 = arith.constant 0 : i32
    return %arg0, %c0_i32, %arg1, %c0_i32_0 : i32, i32, i32, i32
  }
  func.func @transform_1(%arg0: i32, %arg1: i32) -> (i32, i32, i32, i32) {
    %c0_i32 = arith.constant 0 : i32
    %c0_i32_0 = arith.constant 0 : i32
    %c0_i32_1 = arith.constant 0 : i32
    return %arg0, %c0_i32, %arg1, %c0_i32_0 : i32, i32, i32, i32
  }
  func.func @transform_2(%arg0: i32, %arg1: i32) -> (i32, i32, i32) {
    %c0_i32 = arith.constant 0 : i32
    %c0_i32_0 = arith.constant 0 : i32
    return %arg0, %c0_i32, %arg1 : i32, i32, i32
  }
}

</mosaic_0001>

<llo_original>
// kernel: tpu_custom_call.1
$region0: #{tpu_custom_call.1}
  #allocation0 [shape = 'u32[]', space=smem, size = 0x4, offset = 0x4, fixed_abs, tag = 'smem constant byte address 0x4 - core index']
  #allocation1 [shape = 'u32[144,128]{1,0:T(1,128)}', space=vmem, size = 0x12000, scoped, tag = 'internal scratch']
  #allocation8 [shape = 's32[]', space=sflag, size = 0x4, offset = 0, fixed_abs, tag = 'sflag constant byte address 0x0 - dummy sync flag']
  %s0 = inlined_call_operand.hbm [shape: f32[2,4,2,128], index: 0, kind: input, shape index: {}]
  %s1 = inlined_call_operand.hbm [shape: s32[2,1,2,128], index: 1, kind: input, shape index: {}]
  %s2 = inlined_call_operand.hbm [shape: f32[2,1,128], index: 2, kind: output, shape index: {}]
  %s3 = sld [smem:[#allocation0]]
  $region57: #{tpu_custom_call.1} parent=0
    _
  %s5 = ssub.s32 1, %s3
  %s6 = scalar_select 0, %s5, %s3
  $region1: #{tpu_custom_call.1} parent=0
    #allocation2 [shape = 'u8[32768]{0}', space=vmem, size = 0x8000, scoped, tag = 'input window, operand 0']
    #allocation3 [shape = 's32[2]{0}', space=sflag, size = 0x8, scoped, tag = 'scoped memory for tpu_custom_call.1']
    #allocation4 [shape = 's32[2]{0}', space=sflag, size = 0x8, scoped, tag = 'scoped memory for tpu_custom_call.1']
    #allocation5 [shape = 'u8[8192]{0}', space=vmem, size = 0x2000, scoped, tag = 'input window, operand 1']
    #allocation6 [shape = 's32[2]{0}', space=sflag, size = 0x8, scoped, tag = 'scoped memory for tpu_custom_call.1']
    #allocation7 [shape = 'u8[1024]{0}', space=vmem, size = 0x400, scoped, tag = 'output window, operand 0']
    %7 = vsyncpa [#allocation3], 0
    %s8 = scalar_lea.sflag [#allocation3], 1
    %9 = vsyncpa %s8, 0
    %10 = vsyncpa [#allocation6], 0
    %s11 = scalar_lea.sflag [#allocation6], 1
    %12 = vsyncpa %s11, 0
    %13 = vsyncpa [#allocation4], 0
    %s14 = scalar_lea.sflag [#allocation4], 1
    %15 = vsyncpa %s14, 0
    loop: start=0, step=1, limit=4
    $region2: #{tpu_custom_call.1} parent=1 // loop_pre_header
      _
    $region3: #{tpu_custom_call.1} parent=1 // loop_header
      %s17 = sphi 0, %s21
      %p18 = scmp.ge.s32.totalorder %s17, 4
      %s24 = sphi 0, %s36
      %s25 = sphi 0, %s32
      %s26 = sphi 0, %s24
      %s27 = sphi 0, %s25
      %s28 = sphi 0, %s26
      %s29 = sphi 0, %s27
      %s41 = sphi 0, %s43
      %s44 = sphi 0, %s41
      %s45 = sphi 0, %s44
      %s61 = sphi 0, %s45
      %s69 = sphi 0, %s71
      %s72 = sphi 0, %s69
      %s73 = sphi 0, %s72
      %s89 = sphi 0, %s73
      %s97 = sphi 0, %s99
      %s100 = sphi 0, %s97
      %s101 = sphi 0, %s100
      %s117 = sphi 0, %s101
    $region4: #{tpu_custom_call.1} parent=1 // loop_header_branch
      %20 = sbr.rel (%p18) target = $region8
    $region5: #{tpu_custom_call.1} parent=1 // loop_body
      %s22 = ssub.s32 %s17, 1
      %s23 = ssub.s32 %s17, 2
      %s30 = sadd.s32 1, %s25
      %p31 = scmp.ge.s32.totalorder %s30, 1
      %s32 = scalar_select %p31, 0, %s30
      %s33 = sadd.s32 1, %s24
      %s34 = scalar_select %p31, %s33, %s24
      %p35 = scmp.ge.s32.totalorder %s34, 2
      %s36 = scalar_select %p35, 0, %s34
      %s37 = ssub.s32 %s24, %s36
      %s38 = ssub.s32 %s25, %s32
      %s39 = sor.u32 %s37, %s38
      %p40 = scmp.eq.s32.totalorder %s39, 0
      %s42 = sadd.s32 %s41, 1
      %s43 = scalar_select %p40, %s41, %s42
      %p46 = pneg %p40
      %p47 = scmp.eq.s32.totalorder %s17, 1
      %p48 = por %p46, %p47
      %p49 = scmp.ne.s32.totalorder %s41, %s44
      %p50 = scmp.eq.s32.totalorder %s17, 0
      %p51 = por %p49, %p50
      %p52 = scmp.ne.s32.totalorder %s41, %s44
      %p53 = scmp.eq.s32.totalorder %s22, 1
      %p54 = por %p52, %p53
      %p55 = scmp.ne.s32.totalorder %s44, %s45
      %p56 = scmp.eq.s32.totalorder %s22, 0
      %p57 = por %p55, %p56
      %p58 = scmp.ne.s32.totalorder %s44, %s45
      %p59 = scmp.eq.s32.totalorder %s23, 1
      %p60 = por %p58, %p59
      %p62 = scmp.ne.s32.totalorder %s45, %s61
      %p63 = scmp.eq.s32.totalorder %s23, 0
      %p64 = por %p62, %p63
      %s65 = ssub.s32 %s24, %s36
      %s66 = ssub.s32 %s25, %s32
      %s67 = sor.u32 %s65, %s66
      %p68 = scmp.eq.s32.totalorder %s67, 0
      %s70 = sadd.s32 %s69, 1
      %s71 = scalar_select %p68, %s69, %s70
      %p74 = pneg %p68
      %p75 = scmp.eq.s32.totalorder %s17, 1
      %p76 = por %p74, %p75
      %p77 = scmp.ne.s32.totalorder %s69, %s72
      %p78 = scmp.eq.s32.totalorder %s17, 0
      %p79 = por %p77, %p78
      %p80 = scmp.ne.s32.totalorder %s69, %s72
      %p81 = scmp.eq.s32.totalorder %s22, 1
      %p82 = por %p80, %p81
      %p83 = scmp.ne.s32.totalorder %s72, %s73
      %p84 = scmp.eq.s32.totalorder %s22, 0
      %p85 = por %p83, %p84
      %p86 = scmp.ne.s32.totalorder %s72, %s73
      %p87 = scmp.eq.s32.totalorder %s23, 1
      %p88 = por %p86, %p87
      %p90 = scmp.ne.s32.totalorder %s73, %s89
      %p91 = scmp.eq.s32.totalorder %s23, 0
      %p92 = por %p90, %p91
      %s93 = ssub.s32 %s24, %s36
      %s94 = ssub.s32 %s25, %s32
      %s95 = sor.u32 %s93, %s94
      %p96 = scmp.eq.s32.totalorder %s95, 0
      %s98 = sadd.s32 %s97, 1
      %s99 = scalar_select %p96, %s97, %s98
      %p102 = pneg %p96
      %p103 = scmp.eq.s32.totalorder %s17, 1
      %p104 = por %p102, %p103
      %p105 = scmp.ne.s32.totalorder %s97, %s100
      %p106 = scmp.eq.s32.totalorder %s17, 0
      %p107 = por %p105, %p106
      %p108 = scmp.ne.s32.totalorder %s97, %s100
      %p109 = scmp.eq.s32.totalorder %s22, 1
      %p110 = por %p108, %p109
      %p111 = scmp.ne.s32.totalorder %s100, %s101
      %p112 = scmp.eq.s32.totalorder %s22, 0
      %p113 = por %p111, %p112
      %p114 = scmp.ne.s32.totalorder %s100, %s101
      %p115 = scmp.eq.s32.totalorder %s23, 1
      %p116 = por %p114, %p115
      %p118 = scmp.ne.s32.totalorder %s101, %s117
      %p119 = scmp.eq.s32.totalorder %s23, 0
      %p120 = por %p118, %p119
      %p121 = scmp.le.s32.totalorder 1, %s17
      %p122 = scmp.lt.s32.totalorder %s17, 3
      %p123 = pnand %p121, %p122
      %p124 = pneg %p123
      // Predicated region
      $region9: #{tpu_custom_call.1} parent=5 // pred_check
        _
      $region10: #{tpu_custom_call.1} parent=5 // pred_check_branch
        %126 = sbr.rel (%p123) target = $region12
      $region11: #{tpu_custom_call.1} parent=5 // pred_region
        %s127 = ssub.s32 %s17, 1
      $region12: #{tpu_custom_call.1} parent=5 // pred_fallthru
        _
      %p128 = scmp.lt.s32.totalorder %s17, 2
      // Predicated region
      $region13: #{tpu_custom_call.1} parent=5 // pred_check
        %p129 = pneg %p128
      $region14: #{tpu_custom_call.1} parent=5 // pred_check_branch
        %131 = sbr.rel (%p129) target = $region16
      $region15: #{tpu_custom_call.1} parent=5 // pred_region
        // Predicated region
        $region17: #{tpu_custom_call.1} parent=15 // pred_check
          %p132 = pneg %p51
        $region18: #{tpu_custom_call.1} parent=15 // pred_check_branch
          %134 = sbr.rel (%p132) target = $region20
        $region19: #{tpu_custom_call.1} parent=15 // pred_region
          #allocation9 [shape = 'u32[6]{0}', space=smem, size = 0x18, scoped, tag = 'DMA stride descriptor']
          %s135 = sand.u32 %s41, 1
          %s136 = scalar_lea.sflag [#allocation3], %s135
          %s137 = sand.u32 %s41, 1
          %s138 = smul.addr %s137, 32
          %s139 = scalar_lea.vmem [#allocation2], %s138
          %s140 = smul.u32 4, %s25
          %s141 = ssub.s32 1, %s140
          %s142 = smul.u32 128, %s141
          %s144 = ssub.s32 512, %s142
          %145 = vsyncadd %s136, %s144
          %p146 = scmp.ne.s32.totalorder 0, %s142
          %s147 = smul.addr %s24, 4
          %s148 = sadd.s32 %s140, %s147
          %s149 = smul.addr %s148, 32
          %s150 = scalar_lea.hbm %s0, %s149
          %s151 = smul.u32 2, %s141
          %s152 = smul.u32 %s151, 4
          %s154 = sshll.u32 1, 14
          %s155 = sxor.u32 4294967295, %s154
          %s157 = sld [smem:[#allocation0]]
          %s158 = sadd.s32 2, %s157
          %s160 = sshll.u32 7, 26
          %s161 = sxor.u32 4294967295, %s160
          %s162 = sand.u32 0, %s161
          %s163 = sshll.u32 %s158, 26
          %s164 = sor.u32 %s162, %s163
          %s165 = sshll.u32 %s139, 4
          %s166 = int_to_ptr.vmem [resolvable:$true] %s165
          %s167 = sshll.u32 %s152, 4
          %172 = sst [smem:[#allocation9]] 32
          %s173 = scalar_lea.smem [#allocation9], 1
          %174 = sst [smem:[%s173]] 128
          %s175 = scalar_lea.smem [#allocation9], 2
          %176 = sst [smem:[%s175]] %s141
          %s177 = scalar_lea.smem [#allocation9], 3
          %178 = sst [smem:[%s177]] 32
          %s179 = scalar_lea.smem [#allocation9], 4
          %180 = sst [smem:[%s179]] 32
          %s181 = scalar_lea.smem [#allocation9], 5
          %182 = sst [smem:[%s181]] 2
          %184 = dma.general (%p146), %s150, %s167, %s166, %s136, [#allocation8], [#allocation9], %s164, 0
        $region20: #{tpu_custom_call.1} parent=15 // pred_fallthru
          _
        // Predicated region
        $region21: #{tpu_custom_call.1} parent=15 // pred_check
          %p185 = pneg %p79
        $region22: #{tpu_custom_call.1} parent=15 // pred_check_branch
          %187 = sbr.rel (%p185) target = $region24
        $region23: #{tpu_custom_call.1} parent=15 // pred_region
          %s188 = sand.u32 %s69, 1
          %s189 = scalar_lea.sflag [#allocation6], %s188
          %s190 = sand.u32 %s69, 1
          %s191 = smul.addr %s190, 8
          %s192 = scalar_lea.vmem [#allocation5], %s191
          %s193 = smul.u32 4, %s25
          %s194 = ssub.s32 1, %s193
          %s195 = smul.u32 32, %s194
          %s197 = ssub.s32 128, %s195
          %198 = vsyncadd %s189, %s197
          %p199 = scmp.ne.s32.totalorder 0, %s195
          %s200 = sadd.s32 %s193, %s24
          %s201 = smul.addr %s200, 32
          %s202 = scalar_lea.hbm %s1, %s201
          %s203 = smul.u32 2, %s194
          %s204 = sshll.u32 %s192, 4
          %s205 = int_to_ptr.vmem [resolvable:$true] %s204
          %s206 = sshll.u32 %s203, 4
          %210 = dma.hbm_to_vmem [thread:$0]  (%p199), %s202, %s206, %s205, %s189, 32, 32, 2
        $region24: #{tpu_custom_call.1} parent=15 // pred_fallthru
          _
      $region16: #{tpu_custom_call.1} parent=5 // pred_fallthru
        _
      %p211 = scmp.le.s32.totalorder 1, %s17
      %p212 = scmp.lt.s32.totalorder %s17, 3
      %p213 = pnand %p211, %p212
      %p214 = pneg %p213
      // Predicated region
      $region25: #{tpu_custom_call.1} parent=5 // pred_check
        _
      $region26: #{tpu_custom_call.1} parent=5 // pred_check_branch
        %216 = sbr.rel (%p213) target = $region28
      $region27: #{tpu_custom_call.1} parent=5 // pred_region
        %s217 = ssub.s32 %s17, 1
        %s218 = sand.u32 %s44, 1
        %s219 = scalar_lea.sflag [#allocation3], %s218
        %s220 = sand.u32 %s44, 1
        %s221 = smul.addr %s220, 32
        %s222 = scalar_lea.vmem [#allocation2], %s221
        // Predicated region
        $region29: #{tpu_custom_call.1} parent=27 // pred_check
          %p223 = pneg %p57
        $region30: #{tpu_custom_call.1} parent=27 // pred_check_branch
          %225 = sbr.rel (%p223) target = $region32
        $region31: #{tpu_custom_call.1} parent=27 // pred_region
          %226 = dma.done %s219, 512
        $region32: #{tpu_custom_call.1} parent=27 // pred_fallthru
          _
        %s227 = sand.u32 %s72, 1
        %s228 = scalar_lea.sflag [#allocation6], %s227
        %s229 = sand.u32 %s72, 1
        %s230 = smul.addr %s229, 8
        %s231 = scalar_lea.vmem [#allocation5], %s230
        // Predicated region
        $region33: #{tpu_custom_call.1} parent=27 // pred_check
          %p232 = pneg %p85
        $region34: #{tpu_custom_call.1} parent=27 // pred_check_branch
          %234 = sbr.rel (%p232) target = $region36
        $region35: #{tpu_custom_call.1} parent=27 // pred_region
          %235 = dma.done %s228, 128
        $region36: #{tpu_custom_call.1} parent=27 // pred_fallthru
          _
        %s236 = sand.u32 %s44, 1
        %s237 = scalar_lea.sflag [#allocation3], %s236
        %s238 = sand.u32 %s44, 1
        %s239 = smul.addr %s238, 32
        %s240 = scalar_lea.vmem [#allocation2], %s239
        %p241 = pneg %p57
        %p242 = pneg %p54
        %s243 = sand.u32 %s72, 1
        %s244 = scalar_lea.sflag [#allocation6], %s243
        %s245 = sand.u32 %s72, 1
        %s246 = smul.addr %s245, 8
        %s247 = scalar_lea.vmem [#allocation5], %s246
        %p248 = pneg %p85
        %p249 = pneg %p82
        %p250 = pneg %p113
        %p251 = pneg %p110
        %s252 = sand.u32 %s100, 1
        %s253 = scalar_lea.sflag [#allocation4], %s252
        %s254 = sand.u32 %s100, 1
        %s255 = scalar_lea.vmem [#allocation7], %s254
        %s256 = smul.u32 4, %s27
        %s257 = ssub.s32 1, %s256
        %s258 = smul.u32 128, %s257
        %s259 = smul.u32 4, %s27
        %s260 = ssub.s32 1, %s259
        %s261 = smul.u32 32, %s260
        %v262 = vld [vmem:[%s231] sm:$0xff]
        %v263 = vld [vmem:[%s222] sm:$0xff]
        %s264 = scalar_lea.vmem %s222, 8 [#allocation2]
        %v265 = vld [vmem:[%s264] sm:$0xff]
        %s266 = scalar_lea.vmem %s222, 16 [#allocation2]
        %v267 = vld [vmem:[%s266] sm:$0xff]
        %s268 = scalar_lea.vmem %s222, 24 [#allocation2]
        %v269 = vld [vmem:[%s268] sm:$0xff]
        %v270 = vmax.f32 %v263, %v265
        %v271 = vmax.f32 %v270, %v267
        %v272 = vmax.f32 %v271, %v269
        %v273 = vsub.f32 %v263, %v272
        %v274 = vmul.f32 %v273, 1.442695
        %v275 = vpow.pop %v274
        %v276 = vadd.f32 %v275, 0.0
        %vm277 = vcmp.eq.s32.totalorder %v262, 0
        %v278 = vsel %vm277, %v275, 0.0
        %v279 = vsub.f32 %v265, %v272
        %v280 = vmul.f32 %v279, 1.442695
        %v281 = vpow.pop %v280
        %v282 = vadd.f32 %v276, %v281
        %vm283 = vcmp.eq.s32.totalorder %v262, 1
        %v284 = vsel %vm283, %v281, %v278
        %v285 = vsub.f32 %v267, %v272
        %v286 = vmul.f32 %v285, 1.442695
        %v287 = vpow.pop %v286
        %v288 = vadd.f32 %v282, %v287
        %vm289 = vcmp.eq.s32.totalorder %v262, 2
        %v290 = vsel %vm289, %v287, %v284
        %v291 = vsub.f32 %v269, %v272
        %v292 = vmul.f32 %v291, 1.442695
        %v293 = vpow.pop %v292
        %v294 = vadd.f32 %v288, %v293
        %vm295 = vcmp.eq.s32.totalorder %v262, 3
        %v296 = vsel %vm295, %v293, %v290
        %v297 = vrcp.pop %v294
        %v298 = vmul.f32 %v296, %v297
        %v299 = vadd.f32 %v298, 1e-10
        %v300 = vlog2.pop %v299
        %v301 = vmul.f32 %v300, 0.6931472
        %v302 = vsub.f32 1.0, %v299
        %v303 = vmul.f32 %v302, %v302
        %v304 = vsub.f32 0.0, %v303
        %v305 = vmul.f32 %v304, %v301
        %p306 = scmp.eq.s32.totalorder %s27, 0
        // Predicated region
        $region37: #{tpu_custom_call.1} parent=27 // pred_check
          %p307 = pneg %p306
        $region38: #{tpu_custom_call.1} parent=27 // pred_check_branch
          %309 = sbr.rel (%p307) target = $region40
        $region39: #{tpu_custom_call.1} parent=27 // pred_region
          %v310 = vlaneseq
          %v311 = vshrl.u32 %v310, 7
          %v312 = vlaneseq
          %v313 = vand.u32 %v312, 127
          %s314 = smul.u32 %s27, 8
          %v315 = vstv %s314
          %v316 = vadd.s32 %v315, %v311
          %v317 = vmul.u32 %v316, 128
          %v318 = vadd.s32 %v317, %v313
          %vm319 = vcmp.lt.s32.totalorder %v318, 256
          %v320 = vsel %vm319, %v305, 0.0
          %v321 = vrot.slane %v320, 4
          %v322 = vadd.f32 %v320, %v321
          %v323 = vrot.slane %v322, 2
          %v324 = vadd.f32 %v322, %v323
          %v325 = vrot.slane %v324, 1
          %v326 = vadd.f32 %v324, %v325
          %327 = vst [vmem:[%s255] sm:$0x1] %v326
        $region40: #{tpu_custom_call.1} parent=27 // pred_fallthru
          _
        %p328 = scmp.ne.s32.totalorder %s27, 0
        // Predicated region
        $region41: #{tpu_custom_call.1} parent=27 // pred_check
          %p329 = pneg %p328
        $region42: #{tpu_custom_call.1} parent=27 // pred_check_branch
          %331 = sbr.rel (%p329) target = $region44
        $region43: #{tpu_custom_call.1} parent=27 // pred_region
          %v332 = vrot.slane %v305, 4
          %v333 = vadd.f32 %v305, %v332
          %v334 = vrot.slane %v333, 2
          %v335 = vadd.f32 %v333, %v334
          %v336 = vrot.slane %v335, 1
          %v337 = vadd.f32 %v335, %v336
          %338 = vst [vmem:[%s255] sm:$0x1] %v337
        $region44: #{tpu_custom_call.1} parent=27 // pred_fallthru
          _
        %s339 = sand.u32 %s100, 1
        %s340 = scalar_lea.sflag [#allocation4], %s339
        %s341 = sand.u32 %s100, 1
        %s342 = scalar_lea.vmem [#allocation7], %s341
        // Predicated region
        $region45: #{tpu_custom_call.1} parent=27 // pred_check
          %p343 = pneg %p110
        $region46: #{tpu_custom_call.1} parent=27 // pred_check_branch
          %345 = sbr.rel (%p343) target = $region48
        $region47: #{tpu_custom_call.1} parent=27 // pred_region
          %s347 = ssub.s32 16, 16
          %348 = vsyncadd %s340, %s347
          %s349 = sadd.s32 %s27, %s26
          %s350 = smul.addr %s349, 16
          %s351 = scalar_lea.hbm %s2, %s350
          %s353 = sshll.u32 %s342, 4
          %s354 = int_to_ptr.vmem [resolvable:$true] %s353
          %356 = dma.vmem_to_hbm [thread:$0]  %s354, 16, %s351, %s340
        $region48: #{tpu_custom_call.1} parent=27 // pred_fallthru
          _
      $region28: #{tpu_custom_call.1} parent=5 // pred_fallthru
        _
      %p357 = scmp.le.s32.totalorder 2, %s17
      // Predicated region
      $region49: #{tpu_custom_call.1} parent=5 // pred_check
        %p358 = pneg %p357
      $region50: #{tpu_custom_call.1} parent=5 // pred_check_branch
        %360 = sbr.rel (%p358) target = $region52
      $region51: #{tpu_custom_call.1} parent=5 // pred_region
        %s361 = ssub.s32 %s17, 2
        // Predicated region
        $region53: #{tpu_custom_call.1} parent=51 // pred_check
          %p362 = pneg %p116
        $region54: #{tpu_custom_call.1} parent=51 // pred_check_branch
          %364 = sbr.rel (%p362) target = $region56
        $region55: #{tpu_custom_call.1} parent=51 // pred_region
          %s365 = sand.u32 %s101, 1
          %s366 = scalar_lea.sflag [#allocation4], %s365
          %s367 = sand.u32 %s101, 1
          %s368 = scalar_lea.vmem [#allocation7], %s367
          %369 = dma.done %s366, 16
        $region56: #{tpu_custom_call.1} parent=51 // pred_fallthru
          _
      $region52: #{tpu_custom_call.1} parent=5 // pred_fallthru
        _
    $region6: #{tpu_custom_call.1} parent=1 // loop_footer
      %s21 = sadd.s32 1, %s17
    $region7: #{tpu_custom_call.1} parent=1 // loop_footer_branch
      %16 = sbr.rel target = $region3
    $region8: #{tpu_custom_call.1} parent=1 // loop_exit
      _
    %370 = vsyncpa [#allocation3], 1
    %s371 = scalar_lea.sflag [#allocation3], 1
    %372 = vsyncpa %s371, 1
    %373 = vsyncpa [#allocation6], 1
    %s374 = scalar_lea.sflag [#allocation6], 1
    %375 = vsyncpa %s374, 1
    %376 = vsyncpa [#allocation4], 1
    %s377 = scalar_lea.sflag [#allocation4], 1
    %378 = vsyncpa %s377, 1

</llo_original>
